<compile_context>
chip_gen: v7x
topology: tpu7x:2x2x1
jax: 0.10.0
libtpu: 0.0.40
codegen_flags: <defaults>
</compile_context>

<pallas_src>
import functools

import jax
import jax.numpy as jnp
from jax import lax
from jax.experimental import pallas as pl
from jax.experimental.pallas import tpu as pltpu


def _round_up(x, m):
    return ((x + m - 1) // m) * m


# ----------------------------------------------------------------------------
# Fused kernel: stand-in encoder dense + Siamese head (exact head semantics)
# ----------------------------------------------------------------------------
def _fused_encoder_head_kernel(x_ref, w_ref, b_ref, mask_ref, o_ref,
                               acc_ref, cnt_ref, *, h_valid):
    s = pl.program_id(1)

    @pl.when(s == 0)
    def _init():
        acc_ref[...] = jnp.zeros_like(acc_ref)
        cnt_ref[...] = jnp.zeros_like(cnt_ref)

    bt, st, hp = x_ref.shape

    # Stand-in encoder layer: h = tanh(x @ W + b).
    # bf16 operands feed the MXU; accumulation and the epilogue stay f32.
    # (bt, st, hp) -> (bt*st, hp) is a free reshape (st is a multiple of 8).
    x2d = x_ref[...].reshape(bt * st, hp)                              # bf16
    h = jnp.dot(x2d, w_ref[...], preferred_element_type=jnp.float32)   # MXU, f32 acc
    h = jnp.tanh(h + b_ref[...])                                       # VPU + EUP, f32
    h = h.reshape(bt, st, hp)

    # Masked-pooling accumulation for this S tile (f32 VMEM scratch).
    m = mask_ref[...]                                                  # f32 (bt, st)
    acc_ref[...] += jnp.sum(h * m[:, :, None], axis=1)                 # (bt, hp)
    cnt_ref[...] += jnp.sum(m, axis=1, keepdims=True)                  # (bt, 1)

    # Epilogue on the last S step: mean-pool, layernorm (eps=1e-5, no affine),
    # L2 normalize (eps=1e-12).  Padded hidden columns are exactly zero by
    # construction; statistics are restricted to the first `h_valid` columns.
    @pl.when(s == pl.num_programs(1) - 1)
    def _finalize():
        denom = jnp.maximum(cnt_ref[...], 1e-9)                        # clamp(min=1e-9)
        pooled = acc_ref[...] / denom                                  # (bt, hp)

        col = lax.broadcasted_iota(jnp.int32, (bt, hp), 1)
        valid = (col < h_valid).astype(jnp.float32)
        inv_h = jnp.float32(1.0 / h_valid)

        mu = jnp.sum(pooled, axis=-1, keepdims=True) * inv_h
        centered = (pooled - mu) * valid
        var = jnp.sum(centered * centered, axis=-1, keepdims=True) * inv_h
        normed = centered * lax.rsqrt(var + 1e-5)

        sq = jnp.sum(normed * normed, axis=-1, keepdims=True)
        l2 = jnp.sqrt(sq)
        o_ref[...] = normed / jnp.maximum(l2, 1e-12)


# ----------------------------------------------------------------------------
# Wrapper: padding, tiling, pallas_call
# ----------------------------------------------------------------------------
def siamese_network_mpnet_forward(params, input_ids, attention_mask):
    emb_table = params["emb_table"]                                    # (V, H) f32
    w = params["w"]                                                    # (H, H) f32
    bias = params["b"]                                                 # (1, H) f32

    B, S = input_ids.shape
    V, H = emb_table.shape

    # --- tiling: lane-dense hidden, sublane-dense batch, pipelined S axis ----
    Hp = _round_up(H, 128)
    b_tile = 8
    Bp = _round_up(B, b_tile)
    if S <= 256:
        s_tile = _round_up(S, 8)
    else:
        s_tile = 256
    Sp = _round_up(S, s_tile)

    # --- zero padding keeps padded hidden channels / rows / tokens at 0 ------
    emb_p = jnp.zeros((V, Hp), jnp.bfloat16).at[:, :H].set(
        emb_table.astype(jnp.bfloat16))
    w_p = jnp.zeros((Hp, Hp), jnp.bfloat16).at[:H, :H].set(w.astype(jnp.bfloat16))
    bias_p = jnp.zeros((1, Hp), jnp.float32).at[:, :H].set(bias.astype(jnp.float32))

    ids_p = jnp.zeros((Bp, Sp), jnp.int32).at[:B, :S].set(input_ids.astype(jnp.int32))
    mask_p = jnp.zeros((Bp, Sp), jnp.float32).at[:B, :S].set(
        attention_mask.astype(jnp.float32))

    # TODO(synk): the real module runs a full pretrained MPNet transformer; a
    # single embedding + tanh-dense layer stands in, and the token-embedding
    # gather stays in XLA (an in-kernel row gather would need scalar-prefetched
    # ids + pl.Element gather or a one-hot matmul).
    x = jnp.take(emb_p, ids_p, axis=0)                                 # (Bp, Sp, Hp) bf16

    grid = (Bp // b_tile, Sp // s_tile)
    kernel = functools.partial(_fused_encoder_head_kernel, h_valid=H)

    out_padded = pl.pallas_call(
        kernel,
        out_shape=jax.ShapeDtypeStruct((Bp, Hp), jnp.float32),
        grid_spec=pltpu.PrefetchScalarGridSpec(
            num_scalar_prefetch=0,
            grid=grid,
            in_specs=[
                pl.BlockSpec((b_tile, s_tile, Hp), lambda b, s: (b, s, 0)),  # x tile
                pl.BlockSpec((Hp, Hp), lambda b, s: (0, 0)),                 # W (resident)
                pl.BlockSpec((1, Hp), lambda b, s: (0, 0)),                  # bias (resident)
                pl.BlockSpec((b_tile, s_tile), lambda b, s: (b, s)),         # mask tile
            ],
            out_specs=pl.BlockSpec((b_tile, Hp), lambda b, s: (b, 0)),
            scratch_shapes=[
                pltpu.VMEM((b_tile, Hp), jnp.float32),   # masked-sum accumulator
                pltpu.VMEM((b_tile, 1), jnp.float32),    # mask-count accumulator
            ],
        ),
        compiler_params=pltpu.CompilerParams(
            dimension_semantics=("parallel", "arbitrary"),
            vmem_limit_bytes=64 << 20,
        ),
    )(x, w_p, bias_p, mask_p)

    return out_padded[:B, :H]


# ----------------------------------------------------------------------------
# Pure-JAX reference (same bf16 matmul operands) for a numerical sanity check
# ----------------------------------------------------------------------------
def _reference_forward(params, input_ids, attention_mask):
    B, S = input_ids.shape
    x = jnp.take(params["emb_table"].astype(jnp.bfloat16), input_ids, axis=0)
    h = jnp.dot(x.reshape(B * S, -1), params["w"].astype(jnp.bfloat16),
                preferred_element_type=jnp.float32)
    h = jnp.tanh(h + params["b"]).reshape(B, S, -1)
    m = attention_mask.astype(jnp.float32)
    emb = jnp.sum(h * m[:, :, None], axis=1) / jnp.maximum(
        jnp.sum(m, axis=1, keepdims=True), 1e-9)
    mu = jnp.mean(emb, axis=-1, keepdims=True)
    var = jnp.mean((emb - mu) ** 2, axis=-1, keepdims=True)
    emb = (emb - mu) * lax.rsqrt(var + 1e-5)
    n = jnp.sqrt(jnp.sum(emb * emb, axis=-1, keepdims=True))
    return emb / jnp.maximum(n, 1e-12)


if __name__ == "__main__":
    B, S, H, VOCAB = 2, 8, 32, 64

    key = jax.random.PRNGKey(0)
    k_emb, k_w, k_b, k_ids = jax.random.split(key, 4)

    params = {
        "emb_table": jax.random.normal(k_emb, (VOCAB, H), jnp.float32) * 0.02,
        "w": jax.random.normal(k_w, (H, H), jnp.float32) * (1.0 / jnp.sqrt(H)),
        "b": jax.random.normal(k_b, (1, H), jnp.float32) * 0.01,
    }

    input_ids = jax.random.randint(k_ids, (B, S), 0, VOCAB, dtype=jnp.int32)
    # deterministic attention mask with different valid lengths per row
    attention_mask = jnp.stack(
        [
            jnp.where(jnp.arange(S) < 6, 1, 0),
            jnp.where(jnp.arange(S) < 4, 1, 0),
        ]
    ).astype(jnp.int32)

    emb = jax.jit(siamese_network_mpnet_forward)(params, input_ids, attention_mask)
    jax.block_until_ready(emb)

    assert emb.shape == (B, H) and emb.dtype == jnp.float32

    ref = _reference_forward(params, input_ids, attention_mask)
    max_err = float(jnp.max(jnp.abs(emb - ref)))
    assert jnp.allclose(emb, ref, atol=5e-2, rtol=5e-2), max_err

    print("KERNEL_OK")
</pallas_src>

<mosaic_0001>
module attributes {stable_mosaic.version = 11 : i64} {
  func.func @_fused_encoder_head_kernel(%arg0: i32, %arg1: i32, %arg2: memref<8x8x128xbf16, #tpu.memory_space<vmem>>, %arg3: memref<128x128xbf16, #tpu.memory_space<vmem>>, %arg4: memref<1x128xf32, #tpu.memory_space<vmem>>, %arg5: memref<8x8xf32, #tpu.memory_space<vmem>>, %arg6: memref<8x128xf32, #tpu.memory_space<vmem>>, %arg7: memref<8x128xf32, #tpu.memory_space<vmem>>, %arg8: memref<8x1xf32, #tpu.memory_space<vmem>>) attributes {dimension_semantics = [#tpu.dimension_semantics<parallel>, #tpu.dimension_semantics<arbitrary>], iteration_bounds = array<i64: 1, 1>, scalar_prefetch = 0 : i64, scratch_operands = 2 : i64, tpu.core_type = #tpu.core_type<tc>, window_params = [{transform_indices = @transform_0, window_bounds = array<i64: 8, 8, 128>}, {pipeline_mode = #tpu.pipeline_mode<synchronous>, transform_indices = @transform_1, window_bounds = array<i64: 128, 128>}, {pipeline_mode = #tpu.pipeline_mode<synchronous>, transform_indices = @transform_2, window_bounds = array<i64: 1, 128>}, {transform_indices = @transform_3, window_bounds = array<i64: 8, 8>}, {transform_indices = @transform_4, window_bounds = array<i64: 8, 128>}]} {
    %c0_i32 = arith.constant 0 : i32
    %0 = arith.cmpi eq, %arg1, %c0_i32 : i32
    %1 = arith.extui %0 : i1 to i32
    %c0_i32_0 = arith.constant 0 : i32
    %2 = arith.cmpi ne, %1, %c0_i32_0 : i32
    scf.if %2 {
      %cst_21 = arith.constant 0.000000e+00 : f32
      %28 = vector.broadcast %cst_21 : f32 to vector<8x128xf32>
      %c0_22 = arith.constant 0 : index
      %c0_23 = arith.constant 0 : index
      %29 = vector.load %arg7[%c0_22, %c0_23] : memref<8x128xf32, #tpu.memory_space<vmem>>, vector<8x128xf32>
      tpu.vector_store %arg7[%c0_22, %c0_23], %28 {strides = array<i32>} : memref<8x128xf32, #tpu.memory_space<vmem>>, vector<8x128xf32>,
      %cst_24 = arith.constant 0.000000e+00 : f32
      %30 = vector.broadcast %cst_24 : f32 to vector<8x1xf32>
      %c0_25 = arith.constant 0 : index
      %c0_26 = arith.constant 0 : index
      %31 = vector.load %arg8[%c0_25, %c0_26] : memref<8x1xf32, #tpu.memory_space<vmem>>, vector<8x1xf32>
      tpu.vector_store %arg8[%c0_25, %c0_26], %30 {strides = array<i32>} : memref<8x1xf32, #tpu.memory_space<vmem>>, vector<8x1xf32>,
    } else {
    }
    %c0 = arith.constant 0 : index
    %c0_1 = arith.constant 0 : index
    %c0_2 = arith.constant 0 : index
    %3 = vector.load %arg2[%c0, %c0_1, %c0_2] : memref<8x8x128xbf16, #tpu.memory_space<vmem>>, vector<8x8x128xbf16>
    %4 = vector.shape_cast %3 : vector<8x8x128xbf16> to vector<64x128xbf16>
    %c0_3 = arith.constant 0 : index
    %c0_4 = arith.constant 0 : index
    %5 = vector.load %arg3[%c0_3, %c0_4] : memref<128x128xbf16, #tpu.memory_space<vmem>>, vector<128x128xbf16>
    %cst = arith.constant dense<0.000000e+00> : vector<64x128xf32>
    %6 = tpu.matmul %4, %5, %cst {dimension_numbers = #tpu.dot_dimension_numbers<[1], [0], [0], [1], [0, 0, 1, 1], [], []>} : vector<64x128xbf16>, vector<128x128xbf16>, vector<64x128xf32> -> vector<64x128xf32>
    %c0_5 = arith.constant 0 : index
    %c0_6 = arith.constant 0 : index
    %7 = vector.load %arg4[%c0_5, %c0_6] : memref<1x128xf32, #tpu.memory_space<vmem>>, vector<1x128xf32>
    %8 = vector.broadcast %7 : vector<1x128xf32> to vector<64x128xf32>
    %9 = arith.addf %6, %8 : vector<64x128xf32>
    %10 = math.tanh %9 : vector<64x128xf32>
    %11 = vector.shape_cast %10 : vector<64x128xf32> to vector<8x8x128xf32>
    %c0_7 = arith.constant 0 : index
    %c0_8 = arith.constant 0 : index
    %12 = vector.load %arg5[%c0_7, %c0_8] : memref<8x8xf32, #tpu.memory_space<vmem>>, vector<8x8xf32>
    %c0_9 = arith.constant 0 : index
    %c0_10 = arith.constant 0 : index
    %13 = vector.load %arg7[%c0_9, %c0_10] : memref<8x128xf32, #tpu.memory_space<vmem>>, vector<8x128xf32>
    %14 = vector.shape_cast %12 : vector<8x8xf32> to vector<8x8x1xf32>
    %15 = vector.broadcast %14 : vector<8x8x1xf32> to vector<8x8x128xf32>
    %16 = arith.mulf %11, %15 : vector<8x8x128xf32>
    %cst_11 = arith.constant dense<0.000000e+00> : vector<8x128xf32>
    %17 = vector.multi_reduction <add>, %16, %cst_11 [1] : vector<8x8x128xf32> to vector<8x128xf32>
    %18 = arith.addf %13, %17 : vector<8x128xf32>
    %c0_12 = arith.constant 0 : index
    %c0_13 = arith.constant 0 : index
    %19 = vector.load %arg7[%c0_12, %c0_13] : memref<8x128xf32, #tpu.memory_space<vmem>>, vector<8x128xf32>
    tpu.vector_store %arg7[%c0_12, %c0_13], %18 {strides = array<i32>} : memref<8x128xf32, #tpu.memory_space<vmem>>, vector<8x128xf32>,
    %c0_14 = arith.constant 0 : index
    %c0_15 = arith.constant 0 : index
    %20 = vector.load %arg8[%c0_14, %c0_15] : memref<8x1xf32, #tpu.memory_space<vmem>>, vector<8x1xf32>
    %cst_16 = arith.constant dense<0.000000e+00> : vector<8xf32>
    %21 = vector.multi_reduction <add>, %12, %cst_16 [1] : vector<8x8xf32> to vector<8xf32>
    %22 = vector.shape_cast %21 : vector<8xf32> to vector<8x1xf32>
    %23 = arith.addf %20, %22 : vector<8x1xf32>
    %c0_17 = arith.constant 0 : index
    %c0_18 = arith.constant 0 : index
    %24 = vector.load %arg8[%c0_17, %c0_18] : memref<8x1xf32, #tpu.memory_space<vmem>>, vector<8x1xf32>
    tpu.vector_store %arg8[%c0_17, %c0_18], %23 {strides = array<i32>} : memref<8x1xf32, #tpu.memory_space<vmem>>, vector<8x1xf32>,
    %c0_i32_19 = arith.constant 0 : i32
    %25 = arith.cmpi eq, %arg1, %c0_i32_19 : i32
    %26 = arith.extui %25 : i1 to i32
    %c0_i32_20 = arith.constant 0 : i32
    %27 = arith.cmpi ne, %26, %c0_i32_20 : i32
    scf.if %27 {
      %c0_21 = arith.constant 0 : index
      %c0_22 = arith.constant 0 : index
      %28 = vector.load %arg8[%c0_21, %c0_22] : memref<8x1xf32, #tpu.memory_space<vmem>>, vector<8x1xf32>
      %cst_23 = arith.constant 9.99999971E-10 : f32
      %29 = vector.broadcast %cst_23 : f32 to vector<8x1xf32>
      %30 = arith.maximumf %28, %29 : vector<8x1xf32>
      %c0_24 = arith.constant 0 : index
      %c0_25 = arith.constant 0 : index
      %31 = vector.load %arg7[%c0_24, %c0_25] : memref<8x128xf32, #tpu.memory_space<vmem>>, vector<8x128xf32>
      %32 = vector.broadcast %30 : vector<8x1xf32> to vector<8x128xf32>
      %33 = arith.divf %31, %32 : vector<8x128xf32>
      %34 = tpu.iota {dimensions = array<i32: 1>} : vector<8x128xi32>
      %c32_i32 = arith.constant 32 : i32
      %35 = vector.broadcast %c32_i32 : i32 to vector<8x128xi32>
      %36 = arith.cmpi slt, %34, %35 : vector<8x128xi32>
      %37 = arith.extui %36 : vector<8x128xi1> to vector<8x128xi32>
      %38 = arith.sitofp %37 : vector<8x128xi32> to vector<8x128xf32>
      %cst_26 = arith.constant dense<0.000000e+00> : vector<8xf32>
      %39 = vector.multi_reduction <add>, %33, %cst_26 [1] : vector<8x128xf32> to vector<8xf32>
      %40 = vector.shape_cast %39 : vector<8xf32> to vector<8x1xf32>
      %cst_27 = arith.constant 3.125000e-02 : f32
      %41 = vector.broadcast %cst_27 : f32 to vector<8x1xf32>
      %42 = arith.mulf %40, %41 : vector<8x1xf32>
      %43 = vector.broadcast %42 : vector<8x1xf32> to vector<8x128xf32>
      %44 = arith.subf %33, %43 : vector<8x128xf32>
      %45 = arith.mulf %44, %38 : vector<8x128xf32>
      %46 = arith.mulf %45, %45 : vector<8x128xf32>
      %cst_28 = arith.constant dense<0.000000e+00> : vector<8xf32>
      %47 = vector.multi_reduction <add>, %46, %cst_28 [1] : vector<8x128xf32> to vector<8xf32>
      %48 = vector.shape_cast %47 : vector<8xf32> to vector<8x1xf32>
      %cst_29 = arith.constant 3.125000e-02 : f32
      %49 = vector.broadcast %cst_29 : f32 to vector<8x1xf32>
      %50 = arith.mulf %48, %49 : vector<8x1xf32>
      %cst_30 = arith.constant 9.99999974E-6 : f32
      %51 = vector.broadcast %cst_30 : f32 to vector<8x1xf32>
      %52 = arith.addf %50, %51 : vector<8x1xf32>
      %53 = math.rsqrt %52 : vector<8x1xf32>
      %54 = vector.broadcast %53 : vector<8x1xf32> to vector<8x128xf32>
      %55 = arith.mulf %45, %54 : vector<8x128xf32>
      %56 = arith.mulf %55, %55 : vector<8x128xf32>
      %cst_31 = arith.constant dense<0.000000e+00> : vector<8xf32>
      %57 = vector.multi_reduction <add>, %56, %cst_31 [1] : vector<8x128xf32> to vector<8xf32>
      %58 = vector.shape_cast %57 : vector<8xf32> to vector<8x1xf32>
      %59 = math.sqrt %58 : vector<8x1xf32>
      %cst_32 = arith.constant 9.99999996E-13 : f32
      %60 = vector.broadcast %cst_32 : f32 to vector<8x1xf32>
      %61 = arith.maximumf %59, %60 : vector<8x1xf32>
      %62 = vector.broadcast %61 : vector<8x1xf32> to vector<8x128xf32>
      %63 = arith.divf %55, %62 : vector<8x128xf32>
      %c0_33 = arith.constant 0 : index
      %c0_34 = arith.constant 0 : index
      %64 = vector.load %arg6[%c0_33, %c0_34] : memref<8x128xf32, #tpu.memory_space<vmem>>, vector<8x128xf32>
      tpu.vector_store %arg6[%c0_33, %c0_34], %63 {strides = array<i32>} : memref<8x128xf32, #tpu.memory_space<vmem>>, vector<8x128xf32>,
    } else {
    }
    return
  }
  func.func @transform_0(%arg0: i32, %arg1: i32) -> (i32, i32, i32) {
    %c0_i32 = arith.constant 0 : i32
    %c0_i32_0 = arith.constant 0 : i32
    return %arg0, %arg1, %c0_i32 : i32, i32, i32
  }
  func.func @transform_1(%arg0: i32, %arg1: i32) -> (i32, i32) {
    %c0_i32 = arith.constant 0 : i32
    %c0_i32_0 = arith.constant 0 : i32
    %c0_i32_1 = arith.constant 0 : i32
    return %c0_i32, %c0_i32_0 : i32, i32
  }
  func.func @transform_2(%arg0: i32, %arg1: i32) -> (i32, i32) {
    %c0_i32 = arith.constant 0 : i32
    %c0_i32_0 = arith.constant 0 : i32
    %c0_i32_1 = arith.constant 0 : i32
    return %c0_i32, %c0_i32_0 : i32, i32
  }
  func.func @transform_3(%arg0: i32, %arg1: i32) -> (i32, i32) {
    %c0_i32 = arith.constant 0 : i32
    return %arg0, %arg1 : i32, i32
  }
  func.func @transform_4(%arg0: i32, %arg1: i32) -> (i32, i32) {
    %c0_i32 = arith.constant 0 : i32
    %c0_i32_0 = arith.constant 0 : i32
    return %arg0, %c0_i32 : i32, i32
  }
}

</mosaic_0001>

<llo_original>
// kernel: siamese_network_mpnet_forward.1
$region0: #{siamese_network_mpnet_forward.1}
  #allocation0 [shape = 'u32[]', space=smem, size = 0x4, offset = 0x4, fixed_abs, tag = 'smem constant byte address 0x4 - core index']
  #allocation1 [shape = 'u32[144,128]{1,0:T(1,128)}', space=vmem, size = 0x12000, scoped, tag = 'internal scratch']
  #allocation2 [shape = 'f32[8,128]{1,0:T(8,128)}', space=vmem, size = 0x1000, scoped, tag = 'scratch operand']
  #allocation3 [shape = 'f32[8,1]{1,0:T(8,128)}', space=vmem, size = 0x1000, scoped, tag = 'scratch operand']
  %s0 = inlined_call_operand.hbm [shape: bf16[8,8,128], index: 0, kind: input, shape index: {}]
  %s1 = inlined_call_operand.hbm [shape: bf16[128,128], index: 1, kind: input, shape index: {}]
  %s2 = inlined_call_operand.hbm [shape: f32[1,128], index: 2, kind: input, shape index: {}]
  %s3 = inlined_call_operand.hbm [shape: f32[8,8], index: 3, kind: input, shape index: {}]
  %s4 = inlined_call_operand.hbm [shape: f32[8,128], index: 4, kind: output, shape index: {}]
  %s5 = sld [smem:[#allocation0]]
  $region50: #{siamese_network_mpnet_forward.1} parent=0
    _
  %s7 = ssub.s32 1, %s5
  %s8 = scalar_select 0, %s7, %s5
  $region1: #{siamese_network_mpnet_forward.1} parent=0
    #allocation4 [shape = 'u8[16384]{0}', space=vmem, size = 0x4000, scoped, tag = 'input window, operand 0, single buffered']
    #allocation5 [shape = 's32[1]{0}', space=sflag, size = 0x4, scoped, tag = 'scoped memory for siamese_network_mpnet_forward.1']
    #allocation6 [shape = 's32[1]{0}', space=sflag, size = 0x4, scoped, tag = 'scoped memory for siamese_network_mpnet_forward.1']
    #allocation7 [shape = 'u8[32768]{0}', space=vmem, size = 0x8000, scoped, tag = 'input window, operand 1, single buffered']
    #allocation8 [shape = 's32[1]{0}', space=sflag, size = 0x4, scoped, tag = 'scoped memory for siamese_network_mpnet_forward.1']
    #allocation9 [shape = 'u8[512]{0}', space=vmem, size = 0x400, scoped, tag = 'input window, operand 2, single buffered']
    #allocation10 [shape = 'u8[4096]{0}', space=vmem, size = 0x1000, scoped, tag = 'input window, operand 3, single buffered']
    #allocation11 [shape = 's32[1]{0}', space=sflag, size = 0x4, scoped, tag = 'scoped memory for siamese_network_mpnet_forward.1']
    #allocation12 [shape = 'u8[4096]{0}', space=vmem, size = 0x1000, scoped, tag = 'output window, operand 0, single buffered']
    %9 = vsyncpa [#allocation5], 0
    %10 = vsyncpa [#allocation8], 0
    %11 = vsyncpa [#allocation11], 0
    %12 = vsyncpa [#allocation6], 0
    // Predicated region
    $region2: #{siamese_network_mpnet_forward.1} parent=1 // pred_check
      _
    $region3: #{siamese_network_mpnet_forward.1} parent=1 // pred_check_branch
      %14 = sbr.rel (0) target = $region5
    $region4: #{siamese_network_mpnet_forward.1} parent=1 // pred_region
      %s16 = ssub.s32 512, 512
      %17 = vsyncadd [#allocation5], %s16
      %s18 = sshll.u32 [#allocation4], 4
      %s19 = int_to_ptr.vmem [resolvable:$true] %s18
      %24 = dma.hbm_to_vmem [thread:$0]  %s0, 512, %s19, [#allocation5], 64, 64, 4
    $region5: #{siamese_network_mpnet_forward.1} parent=1 // pred_fallthru
      _
    // Predicated region
    $region6: #{siamese_network_mpnet_forward.1} parent=1 // pred_check
      _
    $region7: #{siamese_network_mpnet_forward.1} parent=1 // pred_check_branch
      %26 = sbr.rel (0) target = $region9
    $region8: #{siamese_network_mpnet_forward.1} parent=1 // pred_region
      %s28 = ssub.s32 1024, 1024
      %29 = vsyncadd [#allocation8], %s28
      %s30 = sshll.u32 [#allocation7], 4
      %s31 = int_to_ptr.vmem [resolvable:$true] %s30
      %36 = dma.hbm_to_vmem [thread:$0]  %s1, 1024, %s31, [#allocation8], 64, 64, 4
    $region9: #{siamese_network_mpnet_forward.1} parent=1 // pred_fallthru
      _
    // Predicated region
    $region10: #{siamese_network_mpnet_forward.1} parent=1 // pred_check
      _
    $region11: #{siamese_network_mpnet_forward.1} parent=1 // pred_check_branch
      %38 = sbr.rel (0) target = $region13
    $region12: #{siamese_network_mpnet_forward.1} parent=1 // pred_region
      %s40 = ssub.s32 16, 16
      %41 = vsyncadd [#allocation8], %s40
      %s43 = sshll.u32 [#allocation9], 4
      %s44 = int_to_ptr.vmem [resolvable:$true] %s43
      %46 = dma.hbm_to_vmem [thread:$0]  %s2, 16, %s44, [#allocation8]
    $region13: #{siamese_network_mpnet_forward.1} parent=1 // pred_fallthru
      _
    // Predicated region
    $region14: #{siamese_network_mpnet_forward.1} parent=1 // pred_check
      _
    $region15: #{siamese_network_mpnet_forward.1} parent=1 // pred_check_branch
      %48 = sbr.rel (0) target = $region17
    $region16: #{siamese_network_mpnet_forward.1} parent=1 // pred_region
      %s50 = ssub.s32 128, 128
      %51 = vsyncadd [#allocation11], %s50
      %s53 = sshll.u32 [#allocation10], 4
      %s54 = int_to_ptr.vmem [resolvable:$true] %s53
      %56 = dma.hbm_to_vmem [thread:$0]  %s3, 128, %s54, [#allocation11]
    $region17: #{siamese_network_mpnet_forward.1} parent=1 // pred_fallthru
      _
    // Predicated region
    $region18: #{siamese_network_mpnet_forward.1} parent=1 // pred_check
      _
    $region19: #{siamese_network_mpnet_forward.1} parent=1 // pred_check_branch
      %58 = sbr.rel (0) target = $region21
    $region20: #{siamese_network_mpnet_forward.1} parent=1 // pred_region
      %59 = dma.done [#allocation5], 512
    $region21: #{siamese_network_mpnet_forward.1} parent=1 // pred_fallthru
      _
    // Predicated region
    $region22: #{siamese_network_mpnet_forward.1} parent=1 // pred_check
      _
    $region23: #{siamese_network_mpnet_forward.1} parent=1 // pred_check_branch
      %61 = sbr.rel (0) target = $region25
    $region24: #{siamese_network_mpnet_forward.1} parent=1 // pred_region
      %62 = dma.done [#allocation8], 1024
    $region25: #{siamese_network_mpnet_forward.1} parent=1 // pred_fallthru
      _
    // Predicated region
    $region26: #{siamese_network_mpnet_forward.1} parent=1 // pred_check
      _
    $region27: #{siamese_network_mpnet_forward.1} parent=1 // pred_check_branch
      %64 = sbr.rel (0) target = $region29
    $region28: #{siamese_network_mpnet_forward.1} parent=1 // pred_region
      %65 = dma.done [#allocation8], 16
    $region29: #{siamese_network_mpnet_forward.1} parent=1 // pred_fallthru
      _
    // Predicated region
    $region30: #{siamese_network_mpnet_forward.1} parent=1 // pred_check
      _
    $region31: #{siamese_network_mpnet_forward.1} parent=1 // pred_check_branch
      %67 = sbr.rel (0) target = $region33
    $region32: #{siamese_network_mpnet_forward.1} parent=1 // pred_region
      %68 = dma.done [#allocation11], 128
    $region33: #{siamese_network_mpnet_forward.1} parent=1 // pred_fallthru
      _
    %p70 = scmp.eq.s32.totalorder 0, 0
    // Predicated region
    $region34: #{siamese_network_mpnet_forward.1} parent=1 // pred_check
      %p71 = pneg %p70
    $region35: #{siamese_network_mpnet_forward.1} parent=1 // pred_check_branch
      %73 = sbr.rel (%p71) target = $region37
    $region36: #{siamese_network_mpnet_forward.1} parent=1 // pred_region
      %74 = vst [vmem:[#allocation2] sm:$0xff] 0.0
      %vm75 = vcmask 7168
      %76 = vst.msk [vmem:[#allocation3] sm:$0xff] %vm75, 0.0
    $region37: #{siamese_network_mpnet_forward.1} parent=1 // pred_fallthru
      _
    %v77 = vld [vmem:[#allocation4] sm:$0xf]
    %v78 = vld [vmem:[#allocation4 + $0x4] sm:$0xf]
    %v79 = vld [vmem:[#allocation4 + $0x8] sm:$0xf]
    %v80 = vld [vmem:[#allocation4 + $0xc] sm:$0xf]
    %v81 = vld [vmem:[#allocation4 + $0x10] sm:$0xf]
    %v82 = vld [vmem:[#allocation4 + $0x14] sm:$0xf]
    %v83 = vld [vmem:[#allocation4 + $0x18] sm:$0xf]
    %v84 = vld [vmem:[#allocation4 + $0x1c] sm:$0xf]
    %v85 = vld [vmem:[#allocation7] sm:$0xf]
    %v86 = vld [vmem:[#allocation7 + $0x4] sm:$0xf]
    %v87 = vld [vmem:[#allocation7 + $0x8] sm:$0xf]
    %v88 = vld [vmem:[#allocation7 + $0xc] sm:$0xf]
    %v89 = vld [vmem:[#allocation7 + $0x10] sm:$0xf]
    %v90 = vld [vmem:[#allocation7 + $0x14] sm:$0xf]
    %v91 = vld [vmem:[#allocation7 + $0x18] sm:$0xf]
    %v92 = vld [vmem:[#allocation7 + $0x1c] sm:$0xf]
    %v93 = vld [vmem:[#allocation7 + $0x20] sm:$0xf]
    %v94 = vld [vmem:[#allocation7 + $0x24] sm:$0xf]
    %v95 = vld [vmem:[#allocation7 + $0x28] sm:$0xf]
    %v96 = vld [vmem:[#allocation7 + $0x2c] sm:$0xf]
    %v97 = vld [vmem:[#allocation7 + $0x30] sm:$0xf]
    %v98 = vld [vmem:[#allocation7 + $0x34] sm:$0xf]
    %v99 = vld [vmem:[#allocation7 + $0x38] sm:$0xf]
    %v100 = vld [vmem:[#allocation7 + $0x3c] sm:$0xf]
    %v101 = vld [vmem:[#allocation9] sm:$0x1]
    %v103 = vlaneseq
    %v104 = vshrl.u32 %v103, 7
    %v105 = vsub.s32 0, %v104
    %v106 = vrot.slane %v101, %v105
    %v116 = vunpack.c.l.b16 %v77
    %v117 = vunpack.c.l.b16 %v78
    %v118 = vunpack.c.l.b16 %v79
    %v119 = vunpack.c.l.b16 %v80
    %v120 = vunpack.c.l.b16 %v81
    %v121 = vunpack.c.l.b16 %v82
    %v122 = vunpack.c.l.b16 %v83
    %v123 = vunpack.c.l.b16 %v84
    %v124 = vpack.c.b16 %v117, %v116
    %v125 = vpack.c.b16 %v119, %v118
    %v126 = vpack.c.b16 %v121, %v120
    %v127 = vpack.c.b16 %v123, %v122
    %v148 = vunpack.c.l.b16 %v85
    %v149 = vunpack.c.l.b16 %v86
    %v150 = vunpack.c.l.b16 %v87
    %v151 = vunpack.c.l.b16 %v88
    %v152 = vunpack.c.l.b16 %v89
    %v153 = vunpack.c.l.b16 %v90
    %v154 = vunpack.c.l.b16 %v91
    %v155 = vunpack.c.l.b16 %v92
    %v156 = vunpack.c.l.b16 %v93
    %v157 = vunpack.c.l.b16 %v94
    %v158 = vunpack.c.l.b16 %v95
    %v159 = vunpack.c.l.b16 %v96
    %v160 = vunpack.c.l.b16 %v97
    %v161 = vunpack.c.l.b16 %v98
    %v162 = vunpack.c.l.b16 %v99
    %v163 = vunpack.c.l.b16 %v100
    %v164 = vpack.c.b16 %v149, %v148
    %v165 = vpack.c.b16 %v151, %v150
    %v166 = vpack.c.b16 %v153, %v152
    %v167 = vpack.c.b16 %v155, %v154
    %v168 = vpack.c.b16 %v157, %v156
    %v169 = vpack.c.b16 %v159, %v158
    %v170 = vpack.c.b16 %v161, %v160
    %v171 = vpack.c.b16 %v163, %v162
    %180 = vmatprep.subr.bf16.mxu0 0
    %181 = vmatpush1.bf16.msra.mxu0 %v164
    %182 = vmatprep.subr.bf16.mxu0 0
    %183 = vmatpush1.bf16.msra.mxu0 %v165
    %184 = vmatprep.subr.bf16.mxu0 0
    %185 = vmatpush1.bf16.msra.mxu0 %v166
    %186 = vmatprep.subr.bf16.mxu0 0
    %187 = vmatpush1.bf16.msra.mxu0 %v167
    %188 = vmatprep.subr.bf16.mxu0 0
    %189 = vmatpush1.bf16.msra.mxu0 %v168
    %190 = vmatprep.subr.bf16.mxu0 0
    %191 = vmatpush1.bf16.msra.mxu0 %v169
    %192 = vmatprep.subr.bf16.mxu0 0
    %193 = vmatpush1.bf16.msra.mxu0 %v170
    %194 = vmatprep.subr.bf16.mxu0 0
    %195 = vmatpush1.bf16.msra.mxu0 %v171
    %196 = vmatprep.subr.bf16.mxu0 0
    %197 = vmatpush1.bf16.msra.mxu0 0
    %198 = vmatprep.subr.bf16.mxu0 0
    %199 = vmatpush1.bf16.msra.mxu0 0
    %200 = vmatprep.subr.bf16.mxu0 0
    %201 = vmatpush1.bf16.msra.mxu0 0
    %202 = vmatprep.subr.bf16.mxu0 0
    %203 = vmatpush1.bf16.msra.mxu0 0
    %204 = vmatprep.subr.bf16.mxu0 0
    %205 = vmatpush1.bf16.msra.mxu0 0
    %206 = vmatprep.subr.bf16.mxu0 0
    %207 = vmatpush1.bf16.msra.mxu0 0
    %208 = vmatprep.subr.bf16.mxu0 0
    %209 = vmatpush1.bf16.msra.mxu0 0
    %210 = vmatprep.subr.bf16.mxu0 0
    %211 = vmatpush1.bf16.msra.mxu0 0
    %212 = vmatprep.mubr.bf16.mxu0 0
    %213 = vmatmul.mubr.bf16.gmra.mrb[0].mxu0 %v124
    %v214 = vpop.f32.mrb[0].mxu0
    %v215 = vadd.f32 %v106, %v214
    %v216 = vpop.f32.mrb[0].mxu0
    %v217 = vpop.f32.mrb[0].mxu0
    %v218 = vadd.f32 %v106, %v217
    %v219 = vpop.f32.mrb[0].mxu0
    %220 = vmatprep.mubr.bf16.mxu0 0
    %221 = vmatmul.mubr.bf16.gmra.mrb[0].mxu0 %v125
    %v222 = vpop.f32.mrb[0].mxu0
    %v223 = vadd.f32 %v106, %v222
    %v224 = vpop.f32.mrb[0].mxu0
    %v225 = vpop.f32.mrb[0].mxu0
    %v226 = vadd.f32 %v106, %v225
    %v227 = vpop.f32.mrb[0].mxu0
    %228 = vmatprep.mubr.bf16.mxu0 0
    %229 = vmatmul.mubr.bf16.gmra.mrb[0].mxu0 %v126
    %v230 = vpop.f32.mrb[0].mxu0
    %v231 = vadd.f32 %v106, %v230
    %v232 = vpop.f32.mrb[0].mxu0
    %v233 = vpop.f32.mrb[0].mxu0
    %v234 = vadd.f32 %v106, %v233
    %v235 = vpop.f32.mrb[0].mxu0
    %236 = vmatprep.mubr.bf16.mxu0 0
    %237 = vmatmul.mubr.bf16.gmra.mrb[0].mxu0 %v127
    %v238 = vpop.f32.mrb[0].mxu0
    %v239 = vadd.f32 %v106, %v238
    %v240 = vpop.f32.mrb[0].mxu0
    %v241 = vpop.f32.mrb[0].mxu0
    %v242 = vadd.f32 %v106, %v241
    %v243 = vpop.f32.mrb[0].mxu0
    %244 = vdwg.mxu0
    %v245 = vtanh.pop %v215
    %v246 = vtanh.pop %v218
    %v247 = vtanh.pop %v223
    %v248 = vtanh.pop %v226
    %v249 = vtanh.pop %v231
    %v250 = vtanh.pop %v234
    %v251 = vtanh.pop %v239
    %v252 = vtanh.pop %v242
    %v253 = vld [vmem:[#allocation10] sm:$0xff]
    %v254 = vld [vmem:[#allocation2] sm:$0xff]
    %v255 = vlaneseq
    %v256 = vshrl.u32 %v255, 7
    %v257 = vsub.s32 0, %v256
    %v258 = vrot.slane %v253, %v257
    %260 = vbcast.lane.b32.xlu0 %v258, 256
    %v261 = vpop.permute.xlu0 %260
    %v262 = vlaneseq
    %v263 = vshrl.u32 %v262, 7
    %v264 = vsub.s32 1, %v263
    %v265 = vrot.slane %v253, %v264
    %267 = vbcast.lane.b32.xlu0 %v265, 256
    %v268 = vpop.permute.xlu0 %267
    %v269 = vlaneseq
    %v270 = vshrl.u32 %v269, 7
    %v271 = vsub.s32 2, %v270
    %v272 = vrot.slane %v253, %v271
    %274 = vbcast.lane.b32.xlu0 %v272, 256
    %v275 = vpop.permute.xlu0 %274
    %v276 = vlaneseq
    %v277 = vshrl.u32 %v276, 7
    %v278 = vsub.s32 3, %v277
    %v279 = vrot.slane %v253, %v278
    %281 = vbcast.lane.b32.xlu0 %v279, 256
    %v282 = vpop.permute.xlu0 %281
    %v283 = vlaneseq
    %v284 = vshrl.u32 %v283, 7
    %v285 = vsub.s32 4, %v284
    %v286 = vrot.slane %v253, %v285
    %288 = vbcast.lane.b32.xlu0 %v286, 256
    %v289 = vpop.permute.xlu0 %288
    %v290 = vlaneseq
    %v291 = vshrl.u32 %v290, 7
    %v292 = vsub.s32 5, %v291
    %v293 = vrot.slane %v253, %v292
    %295 = vbcast.lane.b32.xlu0 %v293, 256
    %v296 = vpop.permute.xlu0 %295
    %v297 = vlaneseq
    %v298 = vshrl.u32 %v297, 7
    %v299 = vsub.s32 6, %v298
    %v300 = vrot.slane %v253, %v299
    %302 = vbcast.lane.b32.xlu0 %v300, 256
    %v303 = vpop.permute.xlu0 %302
    %v304 = vlaneseq
    %v305 = vshrl.u32 %v304, 7
    %v306 = vsub.s32 7, %v305
    %v307 = vrot.slane %v253, %v306
    %309 = vbcast.lane.b32.xlu0 %v307, 256
    %v310 = vpop.permute.xlu0 %309
    %v311 = vmul.f32 %v245, %v261
    %v312 = vmul.f32 %v246, %v268
    %v313 = vmul.f32 %v247, %v275
    %v314 = vmul.f32 %v248, %v282
    %v315 = vmul.f32 %v249, %v289
    %v316 = vmul.f32 %v250, %v296
    %v317 = vmul.f32 %v251, %v303
    %v318 = vmul.f32 %v252, %v310
    %v319 = vrot.slane %v311, 4
    %v320 = vadd.f32 %v311, %v319
    %v321 = vrot.slane %v320, 2
    %v322 = vadd.f32 %v320, %v321
    %v323 = vrot.slane %v322, 1
    %v324 = vadd.f32 %v322, %v323
    %v325 = vrot.slane %v312, 4
    %v326 = vadd.f32 %v312, %v325
    %v327 = vrot.slane %v326, 2
    %v328 = vadd.f32 %v326, %v327
    %v329 = vrot.slane %v328, 1
    %v330 = vadd.f32 %v328, %v329
    %v331 = vrot.slane %v313, 4
    %v332 = vadd.f32 %v313, %v331
    %v333 = vrot.slane %v332, 2
    %v334 = vadd.f32 %v332, %v333
    %v335 = vrot.slane %v334, 1
    %v336 = vadd.f32 %v334, %v335
    %v337 = vrot.slane %v314, 4
    %v338 = vadd.f32 %v314, %v337
    %v339 = vrot.slane %v338, 2
    %v340 = vadd.f32 %v338, %v339
    %v341 = vrot.slane %v340, 1
    %v342 = vadd.f32 %v340, %v341
    %v343 = vrot.slane %v315, 4
    %v344 = vadd.f32 %v315, %v343
    %v345 = vrot.slane %v344, 2
    %v346 = vadd.f32 %v344, %v345
    %v347 = vrot.slane %v346, 1
    %v348 = vadd.f32 %v346, %v347
    %v349 = vrot.slane %v316, 4
    %v350 = vadd.f32 %v316, %v349
    %v351 = vrot.slane %v350, 2
    %v352 = vadd.f32 %v350, %v351
    %v353 = vrot.slane %v352, 1
    %v354 = vadd.f32 %v352, %v353
    %v355 = vrot.slane %v317, 4
    %v356 = vadd.f32 %v317, %v355
    %v357 = vrot.slane %v356, 2
    %v358 = vadd.f32 %v356, %v357
    %v359 = vrot.slane %v358, 1
    %v360 = vadd.f32 %v358, %v359
    %v361 = vrot.slane %v318, 4
    %v362 = vadd.f32 %v318, %v361
    %v363 = vrot.slane %v362, 2
    %v364 = vadd.f32 %v362, %v363
    %v365 = vrot.slane %v364, 1
    %v366 = vadd.f32 %v364, %v365
    %vm375 = vcmask 1041409
    %v376 = vsel %vm375, %v330, %v324
    %vm377 = vcmask 1042434
    %v378 = vsel %vm377, %v336, %v376
    %vm379 = vcmask 1043459
    %v380 = vsel %vm379, %v342, %v378
    %vm381 = vcmask 1044484
    %v382 = vsel %vm381, %v348, %v380
    %vm383 = vcmask 1045509
    %v384 = vsel %vm383, %v354, %v382
    %vm385 = vcmask 1046534
    %v386 = vsel %vm385, %v360, %v384
    %vm387 = vcmask 1047559
    %v388 = vsel %vm387, %v366, %v386
    %v390 = vadd.f32 %v254, %v388
    %391 = vst [vmem:[#allocation2] sm:$0xff] %v390
    %v392 = vld [vmem:[#allocation3] sm:$0xff]
    %vm393 = vcmask 64512
    %v394 = vsel %vm393, %v253, 0.0
    %395 = vadd.xlane.f32.xlu0 %v394
    %v396 = vpop.xlane.xlu0 %395
    %v397 = vadd.f32 %v392, %v396
    %vm398 = vcmask 7168
    %399 = vst.msk [vmem:[#allocation3] sm:$0xff] %vm398, %v397
    // Predicated region
    $region38: #{siamese_network_mpnet_forward.1} parent=1 // pred_check
      %p400 = pneg %p70
    $region39: #{siamese_network_mpnet_forward.1} parent=1 // pred_check_branch
      %402 = sbr.rel (%p400) target = $region41
    $region40: #{siamese_network_mpnet_forward.1} parent=1 // pred_region
      %v403 = vld [vmem:[#allocation3] sm:$0xff]
      %v404 = vmax.f32 %v403, 1e-09
      %v405 = vld [vmem:[#allocation2] sm:$0xff]
      %407 = vset.pattern.permute.xlu0 0
      %408 = vperm.xlu0 %407, %v404
      %v409 = vpop.permute.xlu0 %408
      %v411 = vrcp.pop %v409
      %v412 = vmul.f32 %v405, %v411
      %v413 = vlaneseq
      %v414 = vand.u32 %v413, 127
      %vm415 = vcmp.lt.s32.totalorder %v414, 32
      %v416 = vsel %vm415, 1, 0
      %v417 = vcvt.s32.f32 %v416
      %418 = vadd.xlane.f32.xlu0 %v412
      %v419 = vpop.xlane.xlu0 %418
      %v420 = vmul.f32 %v419, 0.03125
      %v421 = vsub.f32 %v412, %v420
      %v422 = vmul.f32 %v421, %v417
      %v423 = vmul.f32 %v422, %v422
      %424 = vadd.xlane.f32.xlu0 %v423
      %v425 = vpop.xlane.xlu0 %424
      %v426 = vmul.f32 %v425, 0.03125
      %v427 = vadd.f32 %v426, 1e-05
      %v428 = vrsqrt.pop %v427
      %v429 = vmul.f32 %v422, %v428
      %v430 = vmul.f32 %v429, %v429
      %431 = vadd.xlane.f32.xlu0 %v430
      %v432 = vpop.xlane.xlu0 %431
      %v433 = vrsqrt.pop %v432
      %v434 = vmul.f32 %v432, %v433
      %vm435 = vcmp.eq.f32.partialorder %v432, inf
      %v436 = vsel %vm435, %v432, %v434
      %vm437 = vcmp.eq.f32.partialorder %v432, 0.0
      %v438 = vand.u32 %v432, 2147483648
      %v439 = vsel %vm437, %v438, %v436
      %v440 = vmax.f32 %v439, 1e-12
      %v441 = vrcp.pop %v440
      %v442 = vmul.f32 %v429, %v441
      %443 = vst [vmem:[#allocation12] sm:$0xff] %v442
    $region41: #{siamese_network_mpnet_forward.1} parent=1 // pred_fallthru
      _
    // Predicated region
    $region42: #{siamese_network_mpnet_forward.1} parent=1 // pred_check
      _
    $region43: #{siamese_network_mpnet_forward.1} parent=1 // pred_check_branch
      %445 = sbr.rel (0) target = $region45
    $region44: #{siamese_network_mpnet_forward.1} parent=1 // pred_region
      %s447 = ssub.s32 128, 128
      %448 = vsyncadd [#allocation6], %s447
      %s450 = sshll.u32 [#allocation12], 4
      %s451 = int_to_ptr.vmem [resolvable:$true] %s450
      %453 = dma.vmem_to_hbm [thread:$0]  %s451, 128, %s4, [#allocation6]
    $region45: #{siamese_network_mpnet_forward.1} parent=1 // pred_fallthru
      _
    // Predicated region
    $region46: #{siamese_network_mpnet_forward.1} parent=1 // pred_check
      _
    $region47: #{siamese_network_mpnet_forward.1} parent=1 // pred_check_branch
      %455 = sbr.rel (0) target = $region49
    $region48: #{siamese_network_mpnet_forward.1} parent=1 // pred_region
      %456 = dma.done [#allocation6], 128
    $region49: #{siamese_network_mpnet_forward.1} parent=1 // pred_fallthru
      _
    %457 = vsyncpa [#allocation5], 1
    %458 = vsyncpa [#allocation8], 1
    %459 = vsyncpa [#allocation11], 1
    %460 = vsyncpa [#allocation6], 1

</llo_original>
